<compile_context>
chip_gen: v6e
topology: v6e:2x2x1
jax: 0.10.0
libtpu: 0.0.40
codegen_flags: <defaults>
</compile_context>

<pallas_src>
import jax
import jax.numpy as jnp
from jax import lax
from jax.experimental import pallas as pl
from jax.experimental.pallas import tpu as pltpu


def _round_up(x, m):
    return ((x + m - 1) // m) * m


_VMEM_LIMIT = 32 * 1024 * 1024  # safe on v5e/v6e (128 MiB) and v7x (64 MiB)


# ---------------------------------------------------------------------------
# Kernel A: vx = emb_table[argmax(v_x, axis=1)], tiled over Nv ("parallel").
# Small tables (num_emb <= 16): VPU select-accumulate (MXU stays idle anyway).
# Large tables: one-hot @ emb_table on the MXU.
# Note: v_x is lane-sparse when F is small; an (F, Nv) input layout would make
# the DMA lane-dense, but the (Nv, F) interface layout is kept here.
# ---------------------------------------------------------------------------
def _make_vertex_kernel(num_emb, use_select):
    def kernel(x_ref, emb_ref, vx_ref):
        x = x_ref[...]                                        # (tnv, f) f32
        tnv, f = x.shape
        d = vx_ref.shape[1]
        # first-occurrence argmax (matches torch / jnp tie behavior)
        row_max = jnp.max(x, axis=1, keepdims=True)           # (tnv, 1)
        col = lax.broadcasted_iota(jnp.int32, (tnv, f), 1)
        node_type = jnp.min(jnp.where(x == row_max, col, f),
                            axis=1, keepdims=True)            # (tnv, 1) int32
        if use_select:
            acc = jnp.zeros((tnv, d), jnp.float32)
            for e in range(num_emb):                          # static, small
                row = jnp.broadcast_to(emb_ref[e:e + 1, :], (tnv, d))
                acc = jnp.where(node_type == e, row, acc)
            vx_ref[...] = acc
        else:
            emb_iota = lax.broadcasted_iota(jnp.int32, (tnv, num_emb), 1)
            onehot = (node_type == emb_iota).astype(jnp.float32)
            vx_ref[...] = jnp.dot(onehot, emb_ref[...],
                                  preferred_element_type=jnp.float32)
    return kernel


# ---------------------------------------------------------------------------
# Kernel B: fused gather + grouped scatter-add.
# grid = (Ne tiles ["parallel"], B chunks ["arbitrary"]).
# For each Ne tile, only the B chunks in [clo[i], chi[i]) (sorted-by-dst
# ranges, scalar-prefetched) are processed: the needed vx rows are DMA-gathered
# from HBM into a VMEM buffer, then a (tne, tb) one-hot mask routes them into
# the resident f32 output block via one MXU matmul per chunk.
# ---------------------------------------------------------------------------
def _make_edge_kernel(tne, tb):
    def kernel(clo_ref, chi_ref, src_ref,      # scalar-prefetch (SMEM)
               dst_ref, vx_hbm,                # inputs
               ex_ref,                         # output (resident accumulator)
               gbuf, sem):                     # scratch
        i = pl.program_id(0)
        j = pl.program_id(1)

        @pl.when(j == 0)
        def _():
            ex_ref[...] = jnp.zeros_like(ex_ref)

        in_range = jnp.logical_and(j >= clo_ref[i], j < chi_ref[i])

        @pl.when(in_range)
        def _():
            base = j * tb

            # batched row gather: tb async row copies HBM -> VMEM, then drain.
            def _issue(r, carry):
                s = src_ref[base + r]
                pltpu.make_async_copy(vx_hbm.at[pl.ds(s, 1), :],
                                      gbuf.at[pl.ds(r, 1), :], sem).start()
                return carry
            lax.fori_loop(0, tb, _issue, 0)

            def _drain(r, carry):
                pltpu.make_async_copy(vx_hbm.at[pl.ds(0, 1), :],
                                      gbuf.at[pl.ds(r, 1), :], sem).wait()
                return carry
            lax.fori_loop(0, tb, _drain, 0)

            rows = i * tne + lax.broadcasted_iota(jnp.int32, (tne, tb), 0)
            m = (rows == dst_ref[...]).astype(jnp.float32)    # (tne, tb) one-hot
            ex_ref[...] += jnp.dot(m, gbuf[...],
                                   preferred_element_type=jnp.float32)
    return kernel


# ---------------------------------------------------------------------------
# Wrapper
# ---------------------------------------------------------------------------
def embed_ve(v_x, emb_table, boundary_index=None, num_edges=None,
             *, tnv=2048, tne=1024, tb=256):
    """Pallas implementation of EmbedVE.forward.

    v_x:            (N_v, F) float32 vertex features.
    emb_table:      (num_embeddings, D) float32 embedding weight.
    boundary_index: optional (2, B) int array [vertex_idx; edge_idx].
    num_edges:      N_e when boundary_index is given.
    Returns [vx] or [vx, ex].
    """
    v_x = v_x.astype(jnp.float32)
    emb_table = emb_table.astype(jnp.float32)
    nv, f = v_x.shape
    num_emb, d = emb_table.shape

    # ---- vertex embedding (no pad / no slice; partial tail block is fine) ---
    tnv_ = nv if nv <= tnv else tnv           # equal-to-full or multiple of 8
    n_vtiles = pl.cdiv(nv, tnv_)
    use_select = num_emb <= 16
    flops_a = nv * (2 * f + (num_emb * d if use_select else 2 * num_emb * d))

    vx = pl.pallas_call(
        _make_vertex_kernel(num_emb, use_select),
        out_shape=jax.ShapeDtypeStruct((nv, d), jnp.float32),
        grid_spec=pltpu.PrefetchScalarGridSpec(
            num_scalar_prefetch=0,
            grid=(n_vtiles,),
            in_specs=[pl.BlockSpec((tnv_, f), lambda i: (i, 0)),
                      pl.BlockSpec((num_emb, d), lambda i: (0, 0))],
            out_specs=pl.BlockSpec((tnv_, d), lambda i: (i, 0))),
        compiler_params=pltpu.CompilerParams(
            dimension_semantics=("parallel",),
            vmem_limit_bytes=_VMEM_LIMIT),
        cost_estimate=pl.CostEstimate(
            flops=flops_a, transcendentals=0,
            bytes_accessed=4 * (nv * f + num_emb * d + nv * d)),
    )(v_x, emb_table)

    out = [vx]

    if boundary_index is not None:
        assert num_edges is not None
        ne = int(num_edges)
        src = boundary_index[0].astype(jnp.int32).reshape(-1)   # vertex ids
        dst = boundary_index[1].astype(jnp.int32).reshape(-1)   # edge ids
        b = int(src.shape[0])

        # Sort boundaries by destination edge so each Ne tile consumes a
        # contiguous range of entries (grouped-matmul / MoE pattern).
        order = jnp.argsort(dst)
        src_s = src[order]
        dst_s = dst[order]

        tne_ = ne if ne <= tne else tne
        n_etiles = pl.cdiv(ne, tne_)
        sentinel = n_etiles * tne_               # never matches any row id

        tb_ = min(tb, _round_up(b, 128))
        b_pad = _round_up(b, tb_)
        n_chunks = b_pad // tb_

        src_p = jnp.pad(src_s, (0, b_pad - b))   # padded src -> row 0 (masked)
        dst_p = jnp.pad(dst_s, (0, b_pad - b), constant_values=sentinel)

        # Per-Ne-tile ranges in the sorted boundary list, converted to chunks.
        tile_edges = jnp.arange(n_etiles + 1, dtype=jnp.int32) * tne_
        lo = jnp.searchsorted(dst_p, tile_edges[:-1], side='left').astype(jnp.int32)
        hi = jnp.searchsorted(dst_p, tile_edges[1:], side='left').astype(jnp.int32)
        empty = hi == lo
        clo = jnp.where(empty, 0, lo // tb_).astype(jnp.int32)
        chi = jnp.where(empty, 0, (hi + tb_ - 1) // tb_).astype(jnp.int32)

        dst_row = dst_p.reshape(1, b_pad)        # lane-dense dst ids

        def dst_index_map(i, j, clo_ref, chi_ref, src_ref):
            lo_c = clo_ref[i]
            hi_c = jnp.maximum(chi_ref[i] - 1, lo_c)
            jj = jnp.minimum(jnp.maximum(j, lo_c), hi_c)   # clamp -> skipped
            return (0, jj)                                 # chunks reuse a block

        ex = pl.pallas_call(
            _make_edge_kernel(tne_, tb_),
            out_shape=jax.ShapeDtypeStruct((ne, d), jnp.float32),
            grid_spec=pltpu.PrefetchScalarGridSpec(
                num_scalar_prefetch=3,
                grid=(n_etiles, n_chunks),
                in_specs=[pl.BlockSpec((1, tb_), dst_index_map),
                          pl.BlockSpec(memory_space=pl.ANY)],   # vx stays in HBM
                out_specs=pl.BlockSpec(
                    (tne_, d), lambda i, j, clo_ref, chi_ref, src_ref: (i, 0)),
                scratch_shapes=[pltpu.VMEM((tb_, d), jnp.float32),
                                pltpu.SemaphoreType.DMA]),
            compiler_params=pltpu.CompilerParams(
                dimension_semantics=("parallel", "arbitrary"),
                vmem_limit_bytes=_VMEM_LIMIT),
            cost_estimate=pl.CostEstimate(
                flops=2 * b_pad * tne_ * d,
                transcendentals=0,
                bytes_accessed=4 * (b_pad * d + 2 * b_pad + ne * d)),
        )(clo, chi, src_p, dst_row, vx)

        out.append(ex)

    return out


if __name__ == "__main__":
    # Small deterministic problem: 8 vertices with 4 type features,
    # embedding dim 32, 8 edges, each with 2 boundary vertices (B = 16).
    Nv, F, num_emb, D, Ne = 8, 4, 4, 32, 8
    key = jax.random.PRNGKey(0)
    k_x, k_emb = jax.random.split(key)

    v_x = jax.random.normal(k_x, (Nv, F), dtype=jnp.float32)
    emb_table = jax.random.normal(k_emb, (num_emb, D), dtype=jnp.float32)

    # boundary_index[0] = vertex index, boundary_index[1] = edge index.
    src_idx = jnp.array([[e, (e + 1) % Nv] for e in range(Ne)],
                        dtype=jnp.int32).reshape(-1)                  # (2*Ne,)
    dst_idx = jnp.repeat(jnp.arange(Ne, dtype=jnp.int32), 2)          # (2*Ne,)
    boundary_index = jnp.stack([src_idx, dst_idx], axis=0)            # (2, B)

    vx, ex = embed_ve(v_x, emb_table, boundary_index, num_edges=Ne)
    jax.block_until_ready(vx)
    jax.block_until_ready(ex)

    # Pure-JAX reference check (same semantics as the torch module).
    node_type = jnp.argmax(v_x, axis=1)
    ref_vx = emb_table[node_type]
    ref_ex = jnp.zeros((Ne, D), jnp.float32).at[dst_idx].add(ref_vx[src_idx])

    assert jnp.allclose(vx, ref_vx, atol=1e-5), "vertex embedding mismatch"
    assert jnp.allclose(ex, ref_ex, atol=1e-5), "edge scatter_add mismatch"
    print("KERNEL_OK")
</pallas_src>

<mosaic_0001>
module attributes {stable_mosaic.version = 11 : i64} {
  func.func @kernel(%arg0: i32, %arg1: memref<8x4xf32, #tpu.memory_space<vmem>>, %arg2: memref<4x32xf32, #tpu.memory_space<vmem>>, %arg3: memref<8x32xf32, #tpu.memory_space<vmem>>) attributes {dimension_semantics = [#tpu.dimension_semantics<parallel>], iteration_bounds = array<i64: 1>, scalar_prefetch = 0 : i64, scratch_operands = 0 : i64, tpu.core_type = #tpu.core_type<tc>, window_params = [{transform_indices = @transform_0, window_bounds = array<i64: 8, 4>}, {pipeline_mode = #tpu.pipeline_mode<synchronous>, transform_indices = @transform_1, window_bounds = array<i64: 4, 32>}, {transform_indices = @transform_2, window_bounds = array<i64: 8, 32>}]} {
    %c0 = arith.constant 0 : index
    %c0_0 = arith.constant 0 : index
    %0 = vector.load %arg1[%c0, %c0_0] : memref<8x4xf32, #tpu.memory_space<vmem>>, vector<8x4xf32>
    %cst = arith.constant dense<0xFF800000> : vector<8xf32>
    %1 = vector.multi_reduction <maximumf>, %0, %cst [1] : vector<8x4xf32> to vector<8xf32>
    %2 = vector.shape_cast %1 : vector<8xf32> to vector<8x1xf32>
    %3 = tpu.iota {dimensions = array<i32: 1>} : vector<8x4xi32>
    %4 = vector.broadcast %2 : vector<8x1xf32> to vector<8x4xf32>
    %5 = arith.cmpf oeq, %0, %4 : vector<8x4xf32>
    %c4_i32 = arith.constant 4 : i32
    %6 = vector.broadcast %c4_i32 : i32 to vector<8x4xi32>
    %7 = arith.select %5, %3, %6 : vector<8x4xi1>, vector<8x4xi32>
    %cst_1 = arith.constant dense<2147483647> : vector<8xi32>
    %8 = vector.multi_reduction <minsi>, %7, %cst_1 [1] : vector<8x4xi32> to vector<8xi32>
    %9 = vector.shape_cast %8 : vector<8xi32> to vector<8x1xi32>
    %cst_2 = arith.constant 0.000000e+00 : f32
    %10 = vector.broadcast %cst_2 : f32 to vector<8x32xf32>
    %c0_3 = arith.constant 0 : index
    %c0_4 = arith.constant 0 : index
    %11 = vector.load %arg2[%c0_3, %c0_4] : memref<4x32xf32, #tpu.memory_space<vmem>>, vector<1x32xf32>
    %12 = vector.shape_cast %11 : vector<1x32xf32> to vector<1x32xf32>
    %13 = vector.broadcast %12 : vector<1x32xf32> to vector<8x32xf32>
    %c0_i32 = arith.constant 0 : i32
    %14 = vector.broadcast %c0_i32 : i32 to vector<8x1xi32>
    %15 = arith.cmpi eq, %9, %14 : vector<8x1xi32>
    %16 = vector.shape_cast %15 : vector<8x1xi1> to vector<8x1xi1>
    %17 = vector.broadcast %16 : vector<8x1xi1> to vector<8x32xi1>
    %18 = arith.select %17, %13, %10 : vector<8x32xi1>, vector<8x32xf32>
    %c1 = arith.constant 1 : index
    %c0_5 = arith.constant 0 : index
    %19 = vector.load %arg2[%c1, %c0_5] : memref<4x32xf32, #tpu.memory_space<vmem>>, vector<1x32xf32>
    %20 = vector.shape_cast %19 : vector<1x32xf32> to vector<1x32xf32>
    %21 = vector.broadcast %20 : vector<1x32xf32> to vector<8x32xf32>
    %c1_i32 = arith.constant 1 : i32
    %22 = vector.broadcast %c1_i32 : i32 to vector<8x1xi32>
    %23 = arith.cmpi eq, %9, %22 : vector<8x1xi32>
    %24 = vector.shape_cast %23 : vector<8x1xi1> to vector<8x1xi1>
    %25 = vector.broadcast %24 : vector<8x1xi1> to vector<8x32xi1>
    %26 = arith.select %25, %21, %18 : vector<8x32xi1>, vector<8x32xf32>
    %c2 = arith.constant 2 : index
    %c0_6 = arith.constant 0 : index
    %27 = vector.load %arg2[%c2, %c0_6] : memref<4x32xf32, #tpu.memory_space<vmem>>, vector<1x32xf32>
    %28 = vector.shape_cast %27 : vector<1x32xf32> to vector<1x32xf32>
    %29 = vector.broadcast %28 : vector<1x32xf32> to vector<8x32xf32>
    %c2_i32 = arith.constant 2 : i32
    %30 = vector.broadcast %c2_i32 : i32 to vector<8x1xi32>
    %31 = arith.cmpi eq, %9, %30 : vector<8x1xi32>
    %32 = vector.shape_cast %31 : vector<8x1xi1> to vector<8x1xi1>
    %33 = vector.broadcast %32 : vector<8x1xi1> to vector<8x32xi1>
    %34 = arith.select %33, %29, %26 : vector<8x32xi1>, vector<8x32xf32>
    %c3 = arith.constant 3 : index
    %c0_7 = arith.constant 0 : index
    %35 = vector.load %arg2[%c3, %c0_7] : memref<4x32xf32, #tpu.memory_space<vmem>>, vector<1x32xf32>
    %36 = vector.shape_cast %35 : vector<1x32xf32> to vector<1x32xf32>
    %37 = vector.broadcast %36 : vector<1x32xf32> to vector<8x32xf32>
    %c3_i32 = arith.constant 3 : i32
    %38 = vector.broadcast %c3_i32 : i32 to vector<8x1xi32>
    %39 = arith.cmpi eq, %9, %38 : vector<8x1xi32>
    %40 = vector.shape_cast %39 : vector<8x1xi1> to vector<8x1xi1>
    %41 = vector.broadcast %40 : vector<8x1xi1> to vector<8x32xi1>
    %42 = arith.select %41, %37, %34 : vector<8x32xi1>, vector<8x32xf32>
    %c0_8 = arith.constant 0 : index
    %c0_9 = arith.constant 0 : index
    %43 = vector.load %arg3[%c0_8, %c0_9] : memref<8x32xf32, #tpu.memory_space<vmem>>, vector<8x32xf32>
    tpu.vector_store %arg3[%c0_8, %c0_9], %42 {strides = array<i32>} : memref<8x32xf32, #tpu.memory_space<vmem>>, vector<8x32xf32>,
    return
  }
  func.func @transform_0(%arg0: i32) -> (i32, i32) {
    %c0_i32 = arith.constant 0 : i32
    %c0_i32_0 = arith.constant 0 : i32
    return %arg0, %c0_i32 : i32, i32
  }
  func.func @transform_1(%arg0: i32) -> (i32, i32) {
    %c0_i32 = arith.constant 0 : i32
    %c0_i32_0 = arith.constant 0 : i32
    %c0_i32_1 = arith.constant 0 : i32
    return %c0_i32, %c0_i32_0 : i32, i32
  }
  func.func @transform_2(%arg0: i32) -> (i32, i32) {
    %c0_i32 = arith.constant 0 : i32
    %c0_i32_0 = arith.constant 0 : i32
    return %arg0, %c0_i32 : i32, i32
  }
}

</mosaic_0001>

<llo_original>
// kernel: tpu_custom_call.1
$region0: #{tpu_custom_call.1}
  #allocation0 [shape = 'u32[]', space=smem, size = 0x4, offset = 0x4, fixed_abs, tag = 'smem constant byte address 0x4 - core index']
  #allocation1 [shape = 'u32[144,128]{1,0:T(1,128)}', space=vmem, size = 0x12000, scoped, tag = 'internal scratch']
  %s0 = inlined_call_operand.vmem [shape: f32[8,4], index: 0, kind: input, shape index: {}]
  %s1 = inlined_call_operand.vmem [shape: f32[4,32], index: 1, kind: input, shape index: {}]
  %s2 = inlined_call_operand.hbm [shape: f32[8,32], index: 2, kind: output, shape index: {}]
  %s3 = sld [smem:[#allocation0]]
  $region18: #{tpu_custom_call.1} parent=0
    _
  %s5 = ssub.s32 1, %s3
  %s6 = scalar_select 0, %s5, %s3
  $region1: #{tpu_custom_call.1} parent=0
    #allocation2 [shape = 'u8[4096]{0}', space=vmem, size = 0x1000, scoped, tag = 'output window, operand 0, single buffered']
    #allocation3 [shape = 's32[1]{0}', space=sflag, size = 0x4, scoped, tag = 'scoped memory for tpu_custom_call.1']
    %7 = vsyncpa [#allocation3], 0
    // Predicated region
    $region2: #{tpu_custom_call.1} parent=1 // pred_check
      _
    $region3: #{tpu_custom_call.1} parent=1 // pred_check_branch
      %9 = sbr.rel (0) target = $region5
    $region4: #{tpu_custom_call.1} parent=1 // pred_region
      _
    $region5: #{tpu_custom_call.1} parent=1 // pred_fallthru
      _
    // Predicated region
    $region6: #{tpu_custom_call.1} parent=1 // pred_check
      _
    $region7: #{tpu_custom_call.1} parent=1 // pred_check_branch
      %11 = sbr.rel (0) target = $region9
    $region8: #{tpu_custom_call.1} parent=1 // pred_region
      _
    $region9: #{tpu_custom_call.1} parent=1 // pred_fallthru
      _
    %v12 = vld [vmem:[%s0] sm:$0xff]
    %vm13 = vcmask 31744
    %v14 = vsel %vm13, %v12, -inf
    %15 = vmax.xlane.f32.xlu0 %v14
    %v16 = vpop.xlane.xlu0 %15
    %v17 = vlaneseq
    %v18 = vand.u32 %v17, 127
    %vm19 = vcmp.eq.f32.partialorder %v12, %v16
    %v20 = vsel %vm19, %v18, 4
    %v21 = vsel %vm13, %v20, 2147483647
    %v22 = vand.u32 %v21, 65535
    %v23 = vshra.s32 %v21, 16
    %v24 = vcvt.s32.f32 %v22
    %v25 = vcvt.s32.f32 %v23
    %26 = vmin.xlane.f32.xlu0 %v25
    %v27 = vpop.xlane.xlu0 %26
    %vm28 = vcmp.eq.f32.partialorder %v25, %v27
    %v29 = vsel %vm28, %v24, inf
    %30 = vmin.xlane.f32.xlu0 %v29
    %v31 = vpop.xlane.xlu0 %30
    %v32 = vcvt.f32.s32 %v31
    %v33 = vcvt.f32.s32 %v27
    %v34 = vshll.u32 %v33, 16
    %v35 = vadd.s32 %v34, %v32
    %v36 = vld [vmem:[%s1] sm:$0x1]
    %v37 = vlaneseq
    %v38 = vshrl.u32 %v37, 7
    %v39 = vsub.s32 0, %v38
    %v40 = vrot.slane %v36, %v39
    %vm41 = vcmp.eq.s32.totalorder %v35, 0
    %v42 = vsel %vm41, 1, 0
    %vm43 = vcmp.eq.s32.totalorder %v42, 1
    %v44 = vsel %vm43, %v40, 0.0
    %v45 = vld [vmem:[%s1 + $0x1] sm:$0x1]
    %v46 = vlaneseq
    %v47 = vshrl.u32 %v46, 7
    %v48 = vsub.s32 0, %v47
    %v49 = vrot.slane %v45, %v48
    %vm50 = vcmp.eq.s32.totalorder %v35, 1
    %v51 = vsel %vm50, 1, 0
    %vm52 = vcmp.eq.s32.totalorder %v51, 1
    %v53 = vsel %vm52, %v49, %v44
    %v54 = vld [vmem:[%s1 + $0x2] sm:$0x1]
    %v55 = vlaneseq
    %v56 = vshrl.u32 %v55, 7
    %v57 = vsub.s32 0, %v56
    %v58 = vrot.slane %v54, %v57
    %vm59 = vcmp.eq.s32.totalorder %v35, 2
    %v60 = vsel %vm59, 1, 0
    %vm61 = vcmp.eq.s32.totalorder %v60, 1
    %v62 = vsel %vm61, %v58, %v53
    %v63 = vld [vmem:[%s1 + $0x3] sm:$0x1]
    %v64 = vlaneseq
    %v65 = vshrl.u32 %v64, 7
    %v66 = vsub.s32 0, %v65
    %v67 = vrot.slane %v63, %v66
    %vm68 = vcmp.eq.s32.totalorder %v35, 3
    %v69 = vsel %vm68, 1, 0
    %vm70 = vcmp.eq.s32.totalorder %v69, 1
    %v71 = vsel %vm70, %v67, %v62
    %vm72 = vcmask 261120
    %73 = vst.msk [vmem:[#allocation2] sm:$0xff] %vm72, %v71
    // Predicated region
    $region10: #{tpu_custom_call.1} parent=1 // pred_check
      _
    $region11: #{tpu_custom_call.1} parent=1 // pred_check_branch
      %75 = sbr.rel (0) target = $region13
    $region12: #{tpu_custom_call.1} parent=1 // pred_region
      %s77 = ssub.s32 128, 128
      %78 = vsyncadd [#allocation3], %s77
      %s80 = sshll.u32 [#allocation2], 4
      %s81 = int_to_ptr.vmem [resolvable:$true] %s80
      %83 = dma.vmem_to_hbm [thread:$0]  %s81, 128, %s2, [#allocation3]
    $region13: #{tpu_custom_call.1} parent=1 // pred_fallthru
      _
    // Predicated region
    $region14: #{tpu_custom_call.1} parent=1 // pred_check
      _
    $region15: #{tpu_custom_call.1} parent=1 // pred_check_branch
      %85 = sbr.rel (0) target = $region17
    $region16: #{tpu_custom_call.1} parent=1 // pred_region
      %86 = dma.done [#allocation3], 128
    $region17: #{tpu_custom_call.1} parent=1 // pred_fallthru
      _
    %87 = vsyncpa [#allocation3], 1

</llo_original>
